<compile_context>
chip_gen: v5e
topology: v5e:2x2
jax: 0.10.0
libtpu: 0.0.40
codegen_flags: <defaults>
</compile_context>

<pallas_src>
import jax
import jax.numpy as jnp
from jax import lax
from jax.experimental import pallas as pl
from jax.experimental.pallas import tpu as pltpu


_HI = lax.Precision.HIGHEST


def _cbam_kernel(x_ref, w1t_ref, w2t_ref, band_ref, o_ref):
    # x_ref   : (TB, C, L)  VMEM block of the input
    # w1t_ref : (C, Cr)     VMEM   (transposed Conv1d(C, Cr, 1) weight)
    # w2t_ref : (Cr, C)     VMEM   (transposed Conv1d(Cr, C, 1) weight)
    # band_ref: (2L, L)     VMEM   banded spatial-conv matrix [avg taps ; max taps]
    x = x_ref[...].astype(jnp.float32)                 # (TB, C, L)
    tb, C, L = x.shape

    # ---------------- Channel attention ----------------
    avg_c = jnp.sum(x, axis=2) * (1.0 / L)             # (TB, C)  AdaptiveAvgPool1d(1)
    max_c = jnp.max(x, axis=2)                         # (TB, C)  AdaptiveMaxPool1d(1)
    pooled = jnp.concatenate([avg_c, max_c], axis=0)   # (2*TB, C)

    # Shared MLP: one MXU matmul pair for all (avg, max) x batch rows (exact:
    # ReLU and the MLP are per-row).
    h = jnp.maximum(
        jnp.dot(pooled, w1t_ref[...], precision=_HI,
                preferred_element_type=jnp.float32), 0.0)            # (2*TB, Cr)
    y = jnp.dot(h, w2t_ref[...], precision=_HI,
                preferred_element_type=jnp.float32)                   # (2*TB, C)
    ca = jax.nn.sigmoid(y[:tb] + y[tb:])               # (TB, C)

    # ---------------- Spatial attention ----------------
    # x1 is a transient: consumed only by the two cross-channel reductions.
    x1 = x * ca[:, :, None]                            # (TB, C, L)
    sp_avg = jnp.sum(x1, axis=1) * (1.0 / C)           # (TB, L)
    sp_max = jnp.max(x1, axis=1)                       # (TB, L)

    # Conv1d(2, 1, 7, padding=3) as a single lane-dense MXU matmul:
    #   acc[b, j] = sum_l sp_avg[b, l]*Wa[l, j] + sp_max[b, l]*Wm[l, j]
    sp = jnp.concatenate([sp_avg, sp_max], axis=1)     # (TB, 2L)
    acc = jnp.dot(sp, band_ref[...], precision=_HI,
                  preferred_element_type=jnp.float32)  # (TB, L)
    sa = jax.nn.sigmoid(acc)                           # (TB, L)

    # o = x * ca * sa, written as a rank-1 (C,1)*(1,L) scale so x1 need not
    # stay live across the spatial conv.
    o_ref[...] = (x * (ca[:, :, None] * sa[:, None, :])).astype(o_ref.dtype)


def _band_matrix(wsp, L):
    """Banded (2L, L) matrix for Conv1d(2, 1, 7, padding=3, bias=False).

    wsp: (2, 7) conv weight with the (single) output-channel dim squeezed.
    Row block 0..L-1 carries the avg-map taps, rows L..2L-1 the max-map taps.
    """
    l = jnp.arange(L)[:, None]
    j = jnp.arange(L)[None, :]
    k = l - j + 3                                    # tap index, valid in [0, 6]
    valid = (k >= 0) & (k <= 6)
    kc = jnp.clip(k, 0, 6)
    wa = jnp.where(valid, wsp[0, kc], 0.0)
    wm = jnp.where(valid, wsp[1, kc], 0.0)
    return jnp.concatenate([wa, wm], axis=0).astype(jnp.float32)   # (2L, L)


def _pick_tb(B, C, L, itemsize, target_bytes, min_steps=8):
    """Batch-block size for the 1-D grid.

    * Whole batch in one block when it fits the per-step byte budget (tiny
      problems: the ~0.35us/step overhead dominates any split).
    * Otherwise the largest tb under the budget, shrunk if needed so the grid
      has >= min_steps steps (keeps the BlockSpec pipeline double-buffered and
      gives v7x's two TensorCores several steps each).
    * No divisor-of-B requirement: the grid uses cdiv; the ragged last block is
      safe because padded rows only feed padded outputs, which Pallas drops.
    """
    per_elem = max(1, C * L * itemsize)
    cap = max(1, target_bytes // per_elem)
    if B <= cap:
        return int(B)
    tb = int(cap)
    if pl.cdiv(B, tb) < min_steps:
        tb = max(1, pl.cdiv(B, min_steps))
    return int(tb)


def cbam_pallas(x, w1, w2, wsp, *, tb=None, target_bytes=4 << 20):
    """x: (B, C, L); w1: (Cr, C); w2: (C, Cr); wsp: (2, 7).

    target_bytes is the per-grid-step input-block budget; use 8<<20 on v7x.
    """
    B, C, L = x.shape
    Cr = w1.shape[0]
    itemsize = jnp.dtype(x.dtype).itemsize
    if tb is None:
        tb = _pick_tb(B, C, L, itemsize, target_bytes)
    tb = int(min(tb, B))
    grid = (pl.cdiv(B, tb),)

    band = _band_matrix(wsp, L)                        # (2L, L) f32

    # Explicit VMEM budget: double-buffered in+out blocks, resident weights and
    # a few block-sized f32 temporaries (x cast / x1 / ca*sa product).
    block_in = tb * C * L * itemsize
    block_f32 = tb * C * L * 4
    band_bytes = 2 * L * L * 4
    vmem_need = 4 * block_in + 3 * block_f32 + band_bytes + (1 << 20)
    vmem_limit = int(min(max(vmem_need, 16 << 20), 48 << 20))

    return pl.pallas_call(
        _cbam_kernel,
        out_shape=jax.ShapeDtypeStruct((B, C, L), x.dtype),
        grid_spec=pltpu.PrefetchScalarGridSpec(
            num_scalar_prefetch=0,
            grid=grid,
            in_specs=[
                pl.BlockSpec((tb, C, L), lambda b: (b, 0, 0)),
                pl.BlockSpec((C, Cr), lambda b: (0, 0)),
                pl.BlockSpec((Cr, C), lambda b: (0, 0)),
                pl.BlockSpec((2 * L, L), lambda b: (0, 0)),
            ],
            out_specs=pl.BlockSpec((tb, C, L), lambda b: (b, 0, 0)),
        ),
        compiler_params=pltpu.CompilerParams(
            dimension_semantics=("parallel",),
            vmem_limit_bytes=vmem_limit),
    )(x, w1.T, w2.T, band)


def cbam_reference(x, w1, w2, wsp):
    # Pure-JAX reference mirroring the PyTorch module (all convs bias=False).
    avg_c = jnp.mean(x, axis=2, keepdims=True)                   # (B, C, 1)
    max_c = jnp.max(x, axis=2, keepdims=True)                    # (B, C, 1)

    def fc(v):                                                   # (B, C, 1)
        h = jnp.maximum(jnp.einsum('rc,bcl->brl', w1, v, precision=_HI), 0.0)
        return jnp.einsum('cr,brl->bcl', w2, h, precision=_HI)

    ca = jax.nn.sigmoid(fc(avg_c) + fc(max_c))                   # (B, C, 1)
    x1 = x * ca

    sp_avg = jnp.mean(x1, axis=1, keepdims=True)                 # (B, 1, L)
    sp_max = jnp.max(x1, axis=1, keepdims=True)                  # (B, 1, L)
    sp = jnp.concatenate([sp_avg, sp_max], axis=1)               # (B, 2, L)
    sp_p = jnp.pad(sp, ((0, 0), (0, 0), (3, 3)))
    L = x.shape[2]
    conv = jnp.zeros((x.shape[0], 1, L), x.dtype)
    for k in range(7):
        conv = conv + wsp[0, k] * sp_p[:, 0:1, k:k + L] \
                    + wsp[1, k] * sp_p[:, 1:2, k:k + L]
    sa = jax.nn.sigmoid(conv)
    return x1 * sa


if __name__ == "__main__":
    B, C, L = 4, 16, 128          # L multiple of 128 -> lane-dense output block
    reduction = 4
    Cr = C // reduction

    key = jax.random.PRNGKey(0)
    kx, k1, k2, k3 = jax.random.split(key, 4)

    x = jax.random.normal(kx, (B, C, L), dtype=jnp.float32)
    # fc weights: Conv1d(C, Cr, 1) -> (Cr, C); Conv1d(Cr, C, 1) -> (C, Cr)
    w1 = jax.random.normal(k1, (Cr, C), dtype=jnp.float32) * 0.2
    w2 = jax.random.normal(k2, (C, Cr), dtype=jnp.float32) * 0.2
    # spatial Conv1d(2, 1, 7) weight -> (2, 7) (out-channel dim squeezed)
    wsp = jax.random.normal(k3, (2, 7), dtype=jnp.float32) * 0.2

    out = cbam_pallas(x, w1, w2, wsp)
    jax.block_until_ready(out)

    ref = cbam_reference(x, w1, w2, wsp)
    assert out.shape == (B, C, L)
    err = float(jnp.max(jnp.abs(out - ref)))
    # With precision=HIGHEST on every matmul the expected error is ~1e-6; the
    # loose bound only guards against a backend demoting matmul precision.
    assert err < 2e-3, f"mismatch vs reference: max abs err {err}"

    print("KERNEL_OK")
</pallas_src>

<mosaic_0001>
module attributes {stable_mosaic.version = 11 : i64} {
  func.func @_cbam_kernel(%arg0: i32, %arg1: memref<4x16x128xf32, #tpu.memory_space<vmem>>, %arg2: memref<16x4xf32, #tpu.memory_space<vmem>>, %arg3: memref<4x16xf32, #tpu.memory_space<vmem>>, %arg4: memref<256x128xf32, #tpu.memory_space<vmem>>, %arg5: memref<4x16x128xf32, #tpu.memory_space<vmem>>) attributes {dimension_semantics = [#tpu.dimension_semantics<parallel>], iteration_bounds = array<i64: 1>, scalar_prefetch = 0 : i64, scratch_operands = 0 : i64, tpu.core_type = #tpu.core_type<tc>, window_params = [{transform_indices = @transform_0, window_bounds = array<i64: 4, 16, 128>}, {pipeline_mode = #tpu.pipeline_mode<synchronous>, transform_indices = @transform_1, window_bounds = array<i64: 16, 4>}, {pipeline_mode = #tpu.pipeline_mode<synchronous>, transform_indices = @transform_2, window_bounds = array<i64: 4, 16>}, {pipeline_mode = #tpu.pipeline_mode<synchronous>, transform_indices = @transform_3, window_bounds = array<i64: 256, 128>}, {transform_indices = @transform_4, window_bounds = array<i64: 4, 16, 128>}]} {
    %c0 = arith.constant 0 : index
    %c0_0 = arith.constant 0 : index
    %c0_1 = arith.constant 0 : index
    %0 = vector.load %arg1[%c0, %c0_0, %c0_1] : memref<4x16x128xf32, #tpu.memory_space<vmem>>, vector<4x16x128xf32>
    %cst = arith.constant dense<0.000000e+00> : vector<4x16xf32>
    %1 = vector.multi_reduction <add>, %0, %cst [2] : vector<4x16x128xf32> to vector<4x16xf32>
    %cst_2 = arith.constant 7.812500e-03 : f32
    %2 = vector.broadcast %cst_2 : f32 to vector<4x16xf32>
    %3 = arith.mulf %1, %2 : vector<4x16xf32>
    %cst_3 = arith.constant dense<0xFF800000> : vector<4x16xf32>
    %4 = vector.multi_reduction <maximumf>, %0, %cst_3 [2] : vector<4x16x128xf32> to vector<4x16xf32>
    %5 = tpu.concatenate %3, %4 in 0 : vector<4x16xf32>, vector<4x16xf32> -> vector<8x16xf32>
    %c0_4 = arith.constant 0 : index
    %c0_5 = arith.constant 0 : index
    %6 = vector.load %arg2[%c0_4, %c0_5] : memref<16x4xf32, #tpu.memory_space<vmem>>, vector<16x4xf32>
    %cst_6 = arith.constant dense<0.000000e+00> : vector<8x4xf32>
    %7 = tpu.matmul %5, %6, %cst_6 {dimension_numbers = #tpu.dot_dimension_numbers<[1], [0], [0], [1], [0, 0, 1, 1], [], []>, precision = #tpu.contract_precision<fp32>} : vector<8x16xf32>, vector<16x4xf32>, vector<8x4xf32> -> vector<8x4xf32>
    %cst_7 = arith.constant 0.000000e+00 : f32
    %8 = vector.broadcast %cst_7 : f32 to vector<8x4xf32>
    %9 = arith.maximumf %7, %8 : vector<8x4xf32>
    %c0_8 = arith.constant 0 : index
    %c0_9 = arith.constant 0 : index
    %10 = vector.load %arg3[%c0_8, %c0_9] : memref<4x16xf32, #tpu.memory_space<vmem>>, vector<4x16xf32>
    %cst_10 = arith.constant dense<0.000000e+00> : vector<8x16xf32>
    %11 = tpu.matmul %9, %10, %cst_10 {dimension_numbers = #tpu.dot_dimension_numbers<[1], [0], [0], [1], [0, 0, 1, 1], [], []>, precision = #tpu.contract_precision<fp32>} : vector<8x4xf32>, vector<4x16xf32>, vector<8x16xf32> -> vector<8x16xf32>
    %12 = vector.extract_strided_slice %11 {offsets = [0, 0], sizes = [4, 16], strides = [1, 1]} : vector<8x16xf32> to vector<4x16xf32>
    %13 = vector.extract_strided_slice %11 {offsets = [4, 0], sizes = [4, 16], strides = [1, 1]} : vector<8x16xf32> to vector<4x16xf32>
    %14 = arith.addf %12, %13 : vector<4x16xf32>
    %15 = arith.negf %14 : vector<4x16xf32>
    %16 = math.exp %15 : vector<4x16xf32>
    %cst_11 = arith.constant 1.000000e+00 : f32
    %17 = vector.broadcast %cst_11 : f32 to vector<4x16xf32>
    %18 = arith.addf %17, %16 : vector<4x16xf32>
    %19 = arith.divf %17, %18 : vector<4x16xf32>
    %20 = vector.shape_cast %19 : vector<4x16xf32> to vector<4x16x1xf32>
    %21 = vector.broadcast %20 : vector<4x16x1xf32> to vector<4x16x128xf32>
    %22 = arith.mulf %0, %21 : vector<4x16x128xf32>
    %cst_12 = arith.constant dense<0.000000e+00> : vector<4x128xf32>
    %23 = vector.multi_reduction <add>, %22, %cst_12 [1] : vector<4x16x128xf32> to vector<4x128xf32>
    %cst_13 = arith.constant 6.250000e-02 : f32
    %24 = vector.broadcast %cst_13 : f32 to vector<4x128xf32>
    %25 = arith.mulf %23, %24 : vector<4x128xf32>
    %cst_14 = arith.constant dense<0xFF800000> : vector<4x128xf32>
    %26 = vector.multi_reduction <maximumf>, %22, %cst_14 [1] : vector<4x16x128xf32> to vector<4x128xf32>
    %27 = tpu.concatenate %25, %26 in 1 : vector<4x128xf32>, vector<4x128xf32> -> vector<4x256xf32>
    %c0_15 = arith.constant 0 : index
    %c0_16 = arith.constant 0 : index
    %28 = vector.load %arg4[%c0_15, %c0_16] : memref<256x128xf32, #tpu.memory_space<vmem>>, vector<256x128xf32>
    %cst_17 = arith.constant dense<0.000000e+00> : vector<4x128xf32>
    %29 = tpu.matmul %27, %28, %cst_17 {dimension_numbers = #tpu.dot_dimension_numbers<[1], [0], [0], [1], [0, 0, 1, 1], [], []>, precision = #tpu.contract_precision<fp32>} : vector<4x256xf32>, vector<256x128xf32>, vector<4x128xf32> -> vector<4x128xf32>
    %30 = arith.negf %29 : vector<4x128xf32>
    %31 = math.exp %30 : vector<4x128xf32>
    %cst_18 = arith.constant 1.000000e+00 : f32
    %32 = vector.broadcast %cst_18 : f32 to vector<4x128xf32>
    %33 = arith.addf %32, %31 : vector<4x128xf32>
    %34 = arith.divf %32, %33 : vector<4x128xf32>
    %35 = vector.shape_cast %19 : vector<4x16xf32> to vector<4x16x1xf32>
    %36 = vector.shape_cast %34 : vector<4x128xf32> to vector<4x1x128xf32>
    %37 = vector.broadcast %35 : vector<4x16x1xf32> to vector<4x16x128xf32>
    %38 = vector.broadcast %36 : vector<4x1x128xf32> to vector<4x16x128xf32>
    %39 = arith.mulf %37, %38 : vector<4x16x128xf32>
    %40 = arith.mulf %0, %39 : vector<4x16x128xf32>
    %c0_19 = arith.constant 0 : index
    %c0_20 = arith.constant 0 : index
    %c0_21 = arith.constant 0 : index
    %41 = vector.load %arg5[%c0_19, %c0_20, %c0_21] : memref<4x16x128xf32, #tpu.memory_space<vmem>>, vector<4x16x128xf32>
    tpu.vector_store %arg5[%c0_19, %c0_20, %c0_21], %40 {strides = array<i32>} : memref<4x16x128xf32, #tpu.memory_space<vmem>>, vector<4x16x128xf32>,
    return
  }
  func.func @transform_0(%arg0: i32) -> (i32, i32, i32) {
    %c0_i32 = arith.constant 0 : i32
    %c0_i32_0 = arith.constant 0 : i32
    %c0_i32_1 = arith.constant 0 : i32
    return %arg0, %c0_i32, %c0_i32_0 : i32, i32, i32
  }
  func.func @transform_1(%arg0: i32) -> (i32, i32) {
    %c0_i32 = arith.constant 0 : i32
    %c0_i32_0 = arith.constant 0 : i32
    %c0_i32_1 = arith.constant 0 : i32
    return %c0_i32, %c0_i32_0 : i32, i32
  }
  func.func @transform_2(%arg0: i32) -> (i32, i32) {
    %c0_i32 = arith.constant 0 : i32
    %c0_i32_0 = arith.constant 0 : i32
    %c0_i32_1 = arith.constant 0 : i32
    return %c0_i32, %c0_i32_0 : i32, i32
  }
  func.func @transform_3(%arg0: i32) -> (i32, i32) {
    %c0_i32 = arith.constant 0 : i32
    %c0_i32_0 = arith.constant 0 : i32
    %c0_i32_1 = arith.constant 0 : i32
    return %c0_i32, %c0_i32_0 : i32, i32
  }
  func.func @transform_4(%arg0: i32) -> (i32, i32, i32) {
    %c0_i32 = arith.constant 0 : i32
    %c0_i32_0 = arith.constant 0 : i32
    %c0_i32_1 = arith.constant 0 : i32
    return %arg0, %c0_i32, %c0_i32_0 : i32, i32, i32
  }
}

</mosaic_0001>

<llo_original>
// kernel: tpu_custom_call.1
$region0: #{tpu_custom_call.1}
  #allocation0 [shape = 'u32[]', space=smem, size = 0x4, offset = 0x4, fixed_abs, tag = 'smem constant byte address 0x4 - core index']
  #allocation1 [shape = 'u32[72,128]{1,0:T(1,128)}', space=vmem, size = 0x9000, scoped, tag = 'internal scratch']
  %s0 = inlined_call_operand.hbm [shape: f32[4,16,128], index: 0, kind: input, shape index: {}]
  %s1 = inlined_call_operand.vmem [shape: f32[16,4], index: 1, kind: input, shape index: {}]
  %s2 = inlined_call_operand.vmem [shape: f32[4,16], index: 2, kind: input, shape index: {}]
  %s3 = inlined_call_operand.hbm [shape: f32[256,128], index: 3, kind: input, shape index: {}]
  %s4 = inlined_call_operand.hbm [shape: f32[4,16,128], index: 4, kind: output, shape index: {}]
  %s5 = sld [smem:[#allocation0]]
  $region34: #{tpu_custom_call.1} parent=0
    _
  %s7 = ssub.s32 1, %s5
  %s8 = scalar_select 0, %s7, %s5
  $region1: #{tpu_custom_call.1} parent=0
    #allocation2 [shape = 'u8[32768]{0}', space=vmem, size = 0x8000, scoped, tag = 'input window, operand 0, single buffered']
    #allocation3 [shape = 's32[1]{0}', space=sflag, size = 0x4, scoped, tag = 'scoped memory for tpu_custom_call.1']
    #allocation4 [shape = 's32[1]{0}', space=sflag, size = 0x4, scoped, tag = 'scoped memory for tpu_custom_call.1']
    #allocation5 [shape = 'u8[131072]{0}', space=vmem, size = 0x20000, scoped, tag = 'input window, operand 3, single buffered']
    #allocation6 [shape = 's32[1]{0}', space=sflag, size = 0x4, scoped, tag = 'scoped memory for tpu_custom_call.1']
    #allocation7 [shape = 'u8[32768]{0}', space=vmem, size = 0x8000, scoped, tag = 'output window, operand 0, single buffered']
    %9 = vsyncpa [#allocation3], 0
    %10 = vsyncpa [#allocation6], 0
    %11 = vsyncpa [#allocation4], 0
    // Predicated region
    $region2: #{tpu_custom_call.1} parent=1 // pred_check
      _
    $region3: #{tpu_custom_call.1} parent=1 // pred_check_branch
      %13 = sbr.rel (0) target = $region5
    $region4: #{tpu_custom_call.1} parent=1 // pred_region
      %15 = vsyncadd [#allocation3], 0
      %s16 = sshll.u32 %s0, 4
      %s17 = int_to_ptr.hbm [resolvable:$true] %s16
      %s18 = sshll.u32 [#allocation2], 4
      %s19 = int_to_ptr.vmem [resolvable:$true] %s18
      %24 = dma.hbm_to_vmem [thread:$0]  %s17, 1024, %s19, [#allocation3], 128, 128, 8
    $region5: #{tpu_custom_call.1} parent=1 // pred_fallthru
      _
    // Predicated region
    $region6: #{tpu_custom_call.1} parent=1 // pred_check
      _
    $region7: #{tpu_custom_call.1} parent=1 // pred_check_branch
      %26 = sbr.rel (0) target = $region9
    $region8: #{tpu_custom_call.1} parent=1 // pred_region
      _
    $region9: #{tpu_custom_call.1} parent=1 // pred_fallthru
      _
    // Predicated region
    $region10: #{tpu_custom_call.1} parent=1 // pred_check
      _
    $region11: #{tpu_custom_call.1} parent=1 // pred_check_branch
      %28 = sbr.rel (0) target = $region13
    $region12: #{tpu_custom_call.1} parent=1 // pred_region
      _
    $region13: #{tpu_custom_call.1} parent=1 // pred_fallthru
      _
    // Predicated region
    $region14: #{tpu_custom_call.1} parent=1 // pred_check
      _
    $region15: #{tpu_custom_call.1} parent=1 // pred_check_branch
      %30 = sbr.rel (0) target = $region17
    $region16: #{tpu_custom_call.1} parent=1 // pred_region
      %32 = vsyncadd [#allocation6], 0
      %s33 = sshll.u32 %s3, 4
      %s34 = int_to_ptr.hbm [resolvable:$true] %s33
      %s35 = sshll.u32 [#allocation5], 4
      %s36 = int_to_ptr.vmem [resolvable:$true] %s35
      %41 = dma.hbm_to_vmem [thread:$0]  %s34, 4096, %s36, [#allocation6], 128, 128, 8
    $region17: #{tpu_custom_call.1} parent=1 // pred_fallthru
      _
    // Predicated region
    $region18: #{tpu_custom_call.1} parent=1 // pred_check
      _
    $region19: #{tpu_custom_call.1} parent=1 // pred_check_branch
      %43 = sbr.rel (0) target = $region21
    $region20: #{tpu_custom_call.1} parent=1 // pred_region
      %45 = dma.done [#allocation3], 1024
    $region21: #{tpu_custom_call.1} parent=1 // pred_fallthru
      _
    // Predicated region
    $region22: #{tpu_custom_call.1} parent=1 // pred_check
      _
    $region23: #{tpu_custom_call.1} parent=1 // pred_check_branch
      %47 = sbr.rel (0) target = $region25
    $region24: #{tpu_custom_call.1} parent=1 // pred_region
      %49 = dma.done [#allocation6], 4096
    $region25: #{tpu_custom_call.1} parent=1 // pred_fallthru
      _
    %v50 = vld [vmem:[#allocation2] sm:$0xff]
    %v51 = vld [vmem:[#allocation2 + $0x8] sm:$0xff]
    %v52 = vld [vmem:[#allocation2 + $0x10] sm:$0xff]
    %v53 = vld [vmem:[#allocation2 + $0x18] sm:$0xff]
    %v54 = vld [vmem:[#allocation2 + $0x20] sm:$0xff]
    %v55 = vld [vmem:[#allocation2 + $0x28] sm:$0xff]
    %v56 = vld [vmem:[#allocation2 + $0x30] sm:$0xff]
    %v57 = vld [vmem:[#allocation2 + $0x38] sm:$0xff]
    %58 = vadd.xlane.f32.xlu0 %v50
    %v59 = vpop.xlane.xlu0 %58
    %60 = vadd.xlane.f32.xlu0 %v51
    %v61 = vpop.xlane.xlu0 %60
    %62 = vadd.xlane.f32.xlu0 %v52
    %v63 = vpop.xlane.xlu0 %62
    %64 = vadd.xlane.f32.xlu0 %v53
    %v65 = vpop.xlane.xlu0 %64
    %66 = vadd.xlane.f32.xlu0 %v54
    %v67 = vpop.xlane.xlu0 %66
    %68 = vadd.xlane.f32.xlu0 %v55
    %v69 = vpop.xlane.xlu0 %68
    %70 = vadd.xlane.f32.xlu0 %v56
    %v71 = vpop.xlane.xlu0 %70
    %72 = vadd.xlane.f32.xlu0 %v57
    %v73 = vpop.xlane.xlu0 %72
    %v74 = vmul.f32 %v59, 0.0078125
    %v75 = vmul.f32 %v61, 0.0078125
    %v76 = vmul.f32 %v63, 0.0078125
    %v77 = vmul.f32 %v65, 0.0078125
    %v78 = vmul.f32 %v67, 0.0078125
    %v79 = vmul.f32 %v69, 0.0078125
    %v80 = vmul.f32 %v71, 0.0078125
    %v81 = vmul.f32 %v73, 0.0078125
    %82 = vmax.xlane.f32.xlu0 %v50
    %v83 = vpop.xlane.xlu0 %82
    %84 = vmax.xlane.f32.xlu0 %v51
    %v85 = vpop.xlane.xlu0 %84
    %86 = vmax.xlane.f32.xlu0 %v52
    %v87 = vpop.xlane.xlu0 %86
    %88 = vmax.xlane.f32.xlu0 %v53
    %v89 = vpop.xlane.xlu0 %88
    %90 = vmax.xlane.f32.xlu0 %v54
    %v91 = vpop.xlane.xlu0 %90
    %92 = vmax.xlane.f32.xlu0 %v55
    %v93 = vpop.xlane.xlu0 %92
    %94 = vmax.xlane.f32.xlu0 %v56
    %v95 = vpop.xlane.xlu0 %94
    %96 = vmax.xlane.f32.xlu0 %v57
    %v97 = vpop.xlane.xlu0 %96
    %v106 = vlaneseq
    %v107 = vand.u32 %v106, 127
    %v108 = vperm.slane %v74, %v107
    %v109 = vadd.s32 %v107, 4294967288
    %v110 = vperm.slane %v75, %v109
    %vm111 = vcmask 130112
    %v112 = vsel %vm111, %v110, %v108
    %v113 = vperm.slane %v76, %v107
    %v114 = vperm.slane %v77, %v109
    %v115 = vsel %vm111, %v114, %v113
    %v116 = vperm.slane %v78, %v107
    %v117 = vperm.slane %v79, %v109
    %v118 = vsel %vm111, %v117, %v116
    %v119 = vperm.slane %v80, %v107
    %v120 = vperm.slane %v81, %v109
    %v121 = vsel %vm111, %v120, %v119
    %vm122 = vcmask 1041409
    %v123 = vsel %vm122, %v115, %v112
    %vm124 = vcmask 1042434
    %v125 = vsel %vm124, %v118, %v123
    %vm126 = vcmask 1043459
    %v127 = vsel %vm126, %v121, %v125
    %v137 = vperm.slane %v83, %v107
    %v138 = vperm.slane %v85, %v109
    %v139 = vsel %vm111, %v138, %v137
    %v140 = vperm.slane %v87, %v107
    %v141 = vperm.slane %v89, %v109
    %v142 = vsel %vm111, %v141, %v140
    %v143 = vperm.slane %v91, %v107
    %v144 = vperm.slane %v93, %v109
    %v145 = vsel %vm111, %v144, %v143
    %v146 = vperm.slane %v95, %v107
    %v147 = vperm.slane %v97, %v109
    %v148 = vsel %vm111, %v147, %v146
    %vm149 = vcmask 1045509
    %v150 = vsel %vm149, %v142, %v139
    %vm151 = vcmask 1046534
    %v152 = vsel %vm151, %v145, %v150
    %vm153 = vcmask 1047559
    %v154 = vsel %vm153, %v148, %v152
    %vm156 = vcmask 1043456
    %v157 = vsel %vm156, %v127, %v154
    %v158 = vld [vmem:[%s1] sm:$0xff]
    %v159 = vld [vmem:[%s1 + $0x8] sm:$0xff]
    %vm160 = vcmask 130048
    %v162 = vsel %vm160, %v157, 0
    %164 = vmatpush.msra.mxu0 0.0
    %165 = vmatpush.msra.mxu0 0.0
    %166 = vmatpush.msra.mxu0 0.0
    %167 = vmatpush.msra.mxu0 0.0
    %168 = vmatpush.msra.mxu0 0.0
    %169 = vmatpush.msra.mxu0 0.0
    %170 = vmatpush.msra.mxu0 0.0
    %171 = vmatpush.msra.mxu0 0.0
    %172 = vmatpush.msra.mxu0 0.0
    %173 = vmatpush.msra.mxu0 0.0
    %174 = vmatpush.msra.mxu0 0.0
    %175 = vmatpush.msra.mxu0 0.0
    %176 = vmatpush.msra.mxu0 0.0
    %177 = vmatpush.msra.mxu0 0.0
    %v178 = vand.u32 %v159, 4294901760
    %179 = vmatpush.msra.mxu0 %v178
    %v180 = vand.u32 %v158, 4294901760
    %181 = vmatpush.msra.mxu0 %v180
    %v182 = vand.u32 %v162, 4294901760
    %v183 = vsub.f32 %v162, %v182
    %v184 = vand.u32 %v183, 4294901760
    %v185 = vsub.f32 %v183, %v184
    %v186 = vand.u32 %v185, 4294901760
    %187 = vmatmul.f32.gmra.mxu0 %v186
    %v188 = vpop.f32.mrf.mxu0
    %v189 = vadd.f32 0.0, %v188
    %190 = vdwg.mxu0
    %191 = vmatpush.msra.mxu0 0.0
    %192 = vmatpush.msra.mxu0 0.0
    %193 = vmatpush.msra.mxu0 0.0
    %194 = vmatpush.msra.mxu0 0.0
    %195 = vmatpush.msra.mxu0 0.0
    %196 = vmatpush.msra.mxu0 0.0
    %197 = vmatpush.msra.mxu0 0.0
    %198 = vmatpush.msra.mxu0 0.0
    %199 = vmatpush.msra.mxu0 0.0
    %200 = vmatpush.msra.mxu0 0.0
    %201 = vmatpush.msra.mxu0 0.0
    %202 = vmatpush.msra.mxu0 0.0
    %203 = vmatpush.msra.mxu0 0.0
    %204 = vmatpush.msra.mxu0 0.0
    %v205 = vand.u32 %v159, 4294901760
    %v206 = vsub.f32 %v159, %v205
    %v207 = vand.u32 %v206, 4294901760
    %v208 = vsub.f32 %v206, %v207
    %v209 = vand.u32 %v208, 4294901760
    %210 = vmatpush.msra.mxu0 %v209
    %v211 = vand.u32 %v158, 4294901760
    %v212 = vsub.f32 %v158, %v211
    %v213 = vand.u32 %v212, 4294901760
    %v214 = vsub.f32 %v212, %v213
    %v215 = vand.u32 %v214, 4294901760
    %216 = vmatpush.msra.mxu0 %v215
    %v217 = vand.u32 %v162, 4294901760
    %218 = vmatmul.f32.gmra.mxu0 %v217
    %v219 = vpop.f32.mrf.mxu0
    %v220 = vadd.f32 %v189, %v219
    %221 = vdwg.mxu0
    %222 = vmatpush.msra.mxu0 0.0
    %223 = vmatpush.msra.mxu0 0.0
    %224 = vmatpush.msra.mxu0 0.0
    %225 = vmatpush.msra.mxu0 0.0
    %226 = vmatpush.msra.mxu0 0.0
    %227 = vmatpush.msra.mxu0 0.0
    %228 = vmatpush.msra.mxu0 0.0
    %229 = vmatpush.msra.mxu0 0.0
    %230 = vmatpush.msra.mxu0 0.0
    %231 = vmatpush.msra.mxu0 0.0
    %232 = vmatpush.msra.mxu0 0.0
    %233 = vmatpush.msra.mxu0 0.0
    %234 = vmatpush.msra.mxu0 0.0
    %235 = vmatpush.msra.mxu0 0.0
    %v236 = vand.u32 %v159, 4294901760
    %v237 = vsub.f32 %v159, %v236
    %238 = vmatpush.msra.mxu0 %v237
    %v239 = vand.u32 %v158, 4294901760
    %v240 = vsub.f32 %v158, %v239
    %241 = vmatpush.msra.mxu0 %v240
    %v242 = vand.u32 %v162, 4294901760
    %v243 = vsub.f32 %v162, %v242
    %244 = vmatmul.f32.gmra.mxu0 %v243
    %v245 = vpop.f32.mrf.mxu0
    %v246 = vadd.f32 %v220, %v245
    %247 = vdwg.mxu0
    %248 = vmatpush.msra.mxu0 0.0
    %249 = vmatpush.msra.mxu0 0.0
    %250 = vmatpush.msra.mxu0 0.0
    %251 = vmatpush.msra.mxu0 0.0
    %252 = vmatpush.msra.mxu0 0.0
    %253 = vmatpush.msra.mxu0 0.0
    %254 = vmatpush.msra.mxu0 0.0
    %255 = vmatpush.msra.mxu0 0.0
    %256 = vmatpush.msra.mxu0 0.0
    %257 = vmatpush.msra.mxu0 0.0
    %258 = vmatpush.msra.mxu0 0.0
    %259 = vmatpush.msra.mxu0 0.0
    %260 = vmatpush.msra.mxu0 0.0
    %261 = vmatpush.msra.mxu0 0.0
    %v262 = vand.u32 %v159, 4294901760
    %263 = vmatpush.msra.mxu0 %v262
    %v264 = vand.u32 %v158, 4294901760
    %265 = vmatpush.msra.mxu0 %v264
    %v266 = vand.u32 %v162, 4294901760
    %v267 = vsub.f32 %v162, %v266
    %v268 = vand.u32 %v267, 4294901760
    %269 = vmatmul.f32.gmra.mxu0 %v268
    %v270 = vpop.f32.mrf.mxu0
    %v271 = vadd.f32 %v246, %v270
    %272 = vdwg.mxu0
    %273 = vmatpush.msra.mxu0 0.0
    %274 = vmatpush.msra.mxu0 0.0
    %275 = vmatpush.msra.mxu0 0.0
    %276 = vmatpush.msra.mxu0 0.0
    %277 = vmatpush.msra.mxu0 0.0
    %278 = vmatpush.msra.mxu0 0.0
    %279 = vmatpush.msra.mxu0 0.0
    %280 = vmatpush.msra.mxu0 0.0
    %281 = vmatpush.msra.mxu0 0.0
    %282 = vmatpush.msra.mxu0 0.0
    %283 = vmatpush.msra.mxu0 0.0
    %284 = vmatpush.msra.mxu0 0.0
    %285 = vmatpush.msra.mxu0 0.0
    %286 = vmatpush.msra.mxu0 0.0
    %v287 = vand.u32 %v159, 4294901760
    %v288 = vsub.f32 %v159, %v287
    %v289 = vand.u32 %v288, 4294901760
    %290 = vmatpush.msra.mxu0 %v289
    %v291 = vand.u32 %v158, 4294901760
    %v292 = vsub.f32 %v158, %v291
    %v293 = vand.u32 %v292, 4294901760
    %294 = vmatpush.msra.mxu0 %v293
    %v295 = vand.u32 %v162, 4294901760
    %296 = vmatmul.f32.gmra.mxu0 %v295
    %v297 = vpop.f32.mrf.mxu0
    %v298 = vadd.f32 %v271, %v297
    %299 = vdwg.mxu0
    %300 = vmatpush.msra.mxu0 0.0
    %301 = vmatpush.msra.mxu0 0.0
    %302 = vmatpush.msra.mxu0 0.0
    %303 = vmatpush.msra.mxu0 0.0
    %304 = vmatpush.msra.mxu0 0.0
    %305 = vmatpush.msra.mxu0 0.0
    %306 = vmatpush.msra.mxu0 0.0
    %307 = vmatpush.msra.mxu0 0.0
    %308 = vmatpush.msra.mxu0 0.0
    %309 = vmatpush.msra.mxu0 0.0
    %310 = vmatpush.msra.mxu0 0.0
    %311 = vmatpush.msra.mxu0 0.0
    %312 = vmatpush.msra.mxu0 0.0
    %313 = vmatpush.msra.mxu0 0.0
    %v314 = vand.u32 %v159, 4294901760
    %315 = vmatpush.msra.mxu0 %v314
    %v316 = vand.u32 %v158, 4294901760
    %317 = vmatpush.msra.mxu0 %v316
    %v318 = vand.u32 %v162, 4294901760
    %319 = vmatmul.f32.gmra.mxu0 %v318
    %v320 = vpop.f32.mrf.mxu0
    %v321 = vadd.f32 %v298, %v320
    %322 = vdwg.mxu0
    %v323 = vmax.f32 %v321, 0.0
    %v324 = vld [vmem:[%s2] sm:$0xf]
    %vm325 = vcmask 31744
    %v327 = vsel %vm325, %v323, 0
    %v330 = vsel %vm156, %v324, 0
    %332 = vmatpush.msra.mxu0 0.0
    %333 = vmatpush.msra.mxu0 0.0
    %334 = vmatpush.msra.mxu0 0.0
    %335 = vmatpush.msra.mxu0 0.0
    %336 = vmatpush.msra.mxu0 0.0
    %337 = vmatpush.msra.mxu0 0.0
    %338 = vmatpush.msra.mxu0 0.0
    %339 = vmatpush.msra.mxu0 0.0
    %340 = vmatpush.msra.mxu0 0.0
    %341 = vmatpush.msra.mxu0 0.0
    %342 = vmatpush.msra.mxu0 0.0
    %343 = vmatpush.msra.mxu0 0.0
    %344 = vmatpush.msra.mxu0 0.0
    %345 = vmatpush.msra.mxu0 0.0
    %346 = vmatpush.msra.mxu0 0.0
    %v347 = vand.u32 %v330, 4294901760
    %348 = vmatpush.msra.mxu0 %v347
    %v349 = vand.u32 %v327, 4294901760
    %v350 = vsub.f32 %v327, %v349
    %v351 = vand.u32 %v350, 4294901760
    %v352 = vsub.f32 %v350, %v351
    %v353 = vand.u32 %v352, 4294901760
    %354 = vmatmul.f32.gmra.mxu0 %v353
    %v355 = vpop.f32.mrf.mxu0
    %v356 = vadd.f32 0.0, %v355
    %357 = vdwg.mxu0
    %358 = vmatpush.msra.mxu0 0.0
    %359 = vmatpush.msra.mxu0 0.0
    %360 = vmatpush.msra.mxu0 0.0
    %361 = vmatpush.msra.mxu0 0.0
    %362 = vmatpush.msra.mxu0 0.0
    %363 = vmatpush.msra.mxu0 0.0
    %364 = vmatpush.msra.mxu0 0.0
    %365 = vmatpush.msra.mxu0 0.0
    %366 = vmatpush.msra.mxu0 0.0
    %367 = vmatpush.msra.mxu0 0.0
    %368 = vmatpush.msra.mxu0 0.0
    %369 = vmatpush.msra.mxu0 0.0
    %370 = vmatpush.msra.mxu0 0.0
    %371 = vmatpush.msra.mxu0 0.0
    %372 = vmatpush.msra.mxu0 0.0
    %v373 = vand.u32 %v330, 4294901760
    %v374 = vsub.f32 %v330, %v373
    %v375 = vand.u32 %v374, 4294901760
    %v376 = vsub.f32 %v374, %v375
    %v377 = vand.u32 %v376, 4294901760
    %378 = vmatpush.msra.mxu0 %v377
    %v379 = vand.u32 %v327, 4294901760
    %380 = vmatmul.f32.gmra.mxu0 %v379
    %v381 = vpop.f32.mrf.mxu0
    %v382 = vadd.f32 %v356, %v381
    %383 = vdwg.mxu0
    %384 = vmatpush.msra.mxu0 0.0
    %385 = vmatpush.msra.mxu0 0.0
    %386 = vmatpush.msra.mxu0 0.0
    %387 = vmatpush.msra.mxu0 0.0
    %388 = vmatpush.msra.mxu0 0.0
    %389 = vmatpush.msra.mxu0 0.0
    %390 = vmatpush.msra.mxu0 0.0
    %391 = vmatpush.msra.mxu0 0.0
    %392 = vmatpush.msra.mxu0 0.0
    %393 = vmatpush.msra.mxu0 0.0
    %394 = vmatpush.msra.mxu0 0.0
    %395 = vmatpush.msra.mxu0 0.0
    %396 = vmatpush.msra.mxu0 0.0
    %397 = vmatpush.msra.mxu0 0.0
    %398 = vmatpush.msra.mxu0 0.0
    %v399 = vand.u32 %v330, 4294901760
    %v400 = vsub.f32 %v330, %v399
    %401 = vmatpush.msra.mxu0 %v400
    %v402 = vand.u32 %v327, 4294901760
    %v403 = vsub.f32 %v327, %v402
    %404 = vmatmul.f32.gmra.mxu0 %v403
    %v405 = vpop.f32.mrf.mxu0
    %v406 = vadd.f32 %v382, %v405
    %407 = vdwg.mxu0
    %408 = vmatpush.msra.mxu0 0.0
    %409 = vmatpush.msra.mxu0 0.0
    %410 = vmatpush.msra.mxu0 0.0
    %411 = vmatpush.msra.mxu0 0.0
    %412 = vmatpush.msra.mxu0 0.0
    %413 = vmatpush.msra.mxu0 0.0
    %414 = vmatpush.msra.mxu0 0.0
    %415 = vmatpush.msra.mxu0 0.0
    %416 = vmatpush.msra.mxu0 0.0
    %417 = vmatpush.msra.mxu0 0.0
    %418 = vmatpush.msra.mxu0 0.0
    %419 = vmatpush.msra.mxu0 0.0
    %420 = vmatpush.msra.mxu0 0.0
    %421 = vmatpush.msra.mxu0 0.0
    %422 = vmatpush.msra.mxu0 0.0
    %v423 = vand.u32 %v330, 4294901760
    %424 = vmatpush.msra.mxu0 %v423
    %v425 = vand.u32 %v327, 4294901760
    %v426 = vsub.f32 %v327, %v425
    %v427 = vand.u32 %v426, 4294901760
    %428 = vmatmul.f32.gmra.mxu0 %v427
    %v429 = vpop.f32.mrf.mxu0
    %v430 = vadd.f32 %v406, %v429
    %431 = vdwg.mxu0
    %432 = vmatpush.msra.mxu0 0.0
    %433 = vmatpush.msra.mxu0 0.0
    %434 = vmatpush.msra.mxu0 0.0
    %435 = vmatpush.msra.mxu0 0.0
    %436 = vmatpush.msra.mxu0 0.0
    %437 = vmatpush.msra.mxu0 0.0
    %438 = vmatpush.msra.mxu0 0.0
    %439 = vmatpush.msra.mxu0 0.0
    %440 = vmatpush.msra.mxu0 0.0
    %441 = vmatpush.msra.mxu0 0.0
    %442 = vmatpush.msra.mxu0 0.0
    %443 = vmatpush.msra.mxu0 0.0
    %444 = vmatpush.msra.mxu0 0.0
    %445 = vmatpush.msra.mxu0 0.0
    %446 = vmatpush.msra.mxu0 0.0
    %v447 = vand.u32 %v330, 4294901760
    %v448 = vsub.f32 %v330, %v447
    %v449 = vand.u32 %v448, 4294901760
    %450 = vmatpush.msra.mxu0 %v449
    %v451 = vand.u32 %v327, 4294901760
    %452 = vmatmul.f32.gmra.mxu0 %v451
    %v453 = vpop.f32.mrf.mxu0
    %v454 = vadd.f32 %v430, %v453
    %455 = vdwg.mxu0
    %456 = vmatpush.msra.mxu0 0.0
    %457 = vmatpush.msra.mxu0 0.0
    %458 = vmatpush.msra.mxu0 0.0
    %459 = vmatpush.msra.mxu0 0.0
    %460 = vmatpush.msra.mxu0 0.0
    %461 = vmatpush.msra.mxu0 0.0
    %462 = vmatpush.msra.mxu0 0.0
    %463 = vmatpush.msra.mxu0 0.0
    %464 = vmatpush.msra.mxu0 0.0
    %465 = vmatpush.msra.mxu0 0.0
    %466 = vmatpush.msra.mxu0 0.0
    %467 = vmatpush.msra.mxu0 0.0
    %468 = vmatpush.msra.mxu0 0.0
    %469 = vmatpush.msra.mxu0 0.0
    %470 = vmatpush.msra.mxu0 0.0
    %v471 = vand.u32 %v330, 4294901760
    %472 = vmatpush.msra.mxu0 %v471
    %v473 = vand.u32 %v327, 4294901760
    %474 = vmatmul.f32.gmra.mxu0 %v473
    %v475 = vpop.f32.mrf.mxu0
    %v476 = vadd.f32 %v454, %v475
    %477 = vdwg.mxu0
    %v479 = vrot.slane %v476, 4
    %v481 = vadd.f32 %v476, %v479
    %v482 = vxor.u32 %v481, 2147483648
    %v483 = vmul.f32 %v482, 1.442695
    %v484 = vpow.pop %v483
    %v485 = vadd.f32 %v484, 1.0
    %v486 = vrcp.pop %v485
    %v487 = vmul.f32 %v485, %v486
    %v488 = vsub.f32 1.0, %v487
    %v489 = vmul.f32 %v486, %v488
    %v490 = vadd.f32 %v486, %v489
    %vm491 = vweird.f32 %v485
    %vm492 = vweird.f32 %v486
    %vm493 = vmor %vm491, %vm492
    %v494 = vsel %vm493, %v486, %v490
    %v495 = vand.u32 2147483647, %v485
    %vm496 = vcmp.eq.f32.partialorder %v495, 8.507059e+37
    %v497 = vand.u32 %v485, 2147483648
    %v498 = vor.u32 1.1754944e-38, %v497
    %v499 = vsel %vm496, %v498, %v494
    %v500 = vmul.f32 1.0, %v499
    %v501 = vperm.slane %v500, 0
    %v502 = vlaneseq
    %v503 = vshrl.u32 %v502, 7
    %505 = vset.pattern.permute.xlu0 %v503
    %506 = vperm.xlu0 %505, %v501
    %v507 = vpop.permute.xlu0 %506
    %v508 = vlaneseq
    %v509 = vshrl.u32 %v508, 7
    %v510 = vadd.s32 %v509, 8
    %511 = vset.pattern.permute.xlu0 %v510
    %512 = vperm.xlu0 %511, %v501
    %v513 = vpop.permute.xlu0 %512
    %v514 = vperm.slane %v500, 1
    %v515 = vlaneseq
    %v516 = vshrl.u32 %v515, 7
    %518 = vset.pattern.permute.xlu0 %v516
    %519 = vperm.xlu0 %518, %v514
    %v520 = vpop.permute.xlu0 %519
    %v521 = vlaneseq
    %v522 = vshrl.u32 %v521, 7
    %v523 = vadd.s32 %v522, 8
    %524 = vset.pattern.permute.xlu0 %v523
    %525 = vperm.xlu0 %524, %v514
    %v526 = vpop.permute.xlu0 %525
    %v527 = vperm.slane %v500, 2
    %v528 = vlaneseq
    %v529 = vshrl.u32 %v528, 7
    %531 = vset.pattern.permute.xlu0 %v529
    %532 = vperm.xlu0 %531, %v527
    %v533 = vpop.permute.xlu0 %532
    %v534 = vlaneseq
    %v535 = vshrl.u32 %v534, 7
    %v536 = vadd.s32 %v535, 8
    %537 = vset.pattern.permute.xlu0 %v536
    %538 = vperm.xlu0 %537, %v527
    %v539 = vpop.permute.xlu0 %538
    %v540 = vperm.slane %v500, 3
    %v541 = vlaneseq
    %v542 = vshrl.u32 %v541, 7
    %544 = vset.pattern.permute.xlu0 %v542
    %545 = vperm.xlu0 %544, %v540
    %v546 = vpop.permute.xlu0 %545
    %v547 = vlaneseq
    %v548 = vshrl.u32 %v547, 7
    %v549 = vadd.s32 %v548, 8
    %550 = vset.pattern.permute.xlu0 %v549
    %551 = vperm.xlu0 %550, %v540
    %v552 = vpop.permute.xlu0 %551
    %v553 = vmul.f32 %v50, %v507
    %v554 = vmul.f32 %v51, %v513
    %v555 = vmul.f32 %v52, %v520
    %v556 = vmul.f32 %v53, %v526
    %v557 = vmul.f32 %v54, %v533
    %v558 = vmul.f32 %v55, %v539
    %v559 = vmul.f32 %v56, %v546
    %v560 = vmul.f32 %v57, %v552
    %v561 = vadd.f32 %v553, %v554
    %v562 = vrot.slane %v561, 4
    %v563 = vadd.f32 %v561, %v562
    %v564 = vrot.slane %v563, 2
    %v565 = vadd.f32 %v563, %v564
    %v566 = vrot.slane %v565, 1
    %v567 = vadd.f32 %v565, %v566
    %v568 = vadd.f32 %v555, %v556
    %v569 = vrot.slane %v568, 4
    %v570 = vadd.f32 %v568, %v569
    %v571 = vrot.slane %v570, 2
    %v572 = vadd.f32 %v570, %v571
    %v573 = vrot.slane %v572, 1
    %v574 = vadd.f32 %v572, %v573
    %v575 = vadd.f32 %v557, %v558
    %v576 = vrot.slane %v575, 4
    %v577 = vadd.f32 %v575, %v576
    %v578 = vrot.slane %v577, 2
    %v579 = vadd.f32 %v577, %v578
    %v580 = vrot.slane %v579, 1
    %v581 = vadd.f32 %v579, %v580
    %v582 = vadd.f32 %v559, %v560
    %v583 = vrot.slane %v582, 4
    %v584 = vadd.f32 %v582, %v583
    %v585 = vrot.slane %v584, 2
    %v586 = vadd.f32 %v584, %v585
    %v587 = vrot.slane %v586, 1
    %v588 = vadd.f32 %v586, %v587
    %v589 = vmul.f32 %v567, 0.0625
    %v590 = vmul.f32 %v574, 0.0625
    %v591 = vmul.f32 %v581, 0.0625
    %v592 = vmul.f32 %v588, 0.0625
    %v593 = vmax.f32 %v553, %v554
    %v594 = vrot.slane %v593, 4
    %v595 = vmax.f32 %v593, %v594
    %v596 = vrot.slane %v595, 2
    %v597 = vmax.f32 %v595, %v596
    %v598 = vrot.slane %v597, 1
    %v599 = vmax.f32 %v597, %v598
    %v600 = vmax.f32 %v555, %v556
    %v601 = vrot.slane %v600, 4
    %v602 = vmax.f32 %v600, %v601
    %v603 = vrot.slane %v602, 2
    %v604 = vmax.f32 %v602, %v603
    %v605 = vrot.slane %v604, 1
    %v606 = vmax.f32 %v604, %v605
    %v607 = vmax.f32 %v557, %v558
    %v608 = vrot.slane %v607, 4
    %v609 = vmax.f32 %v607, %v608
    %v610 = vrot.slane %v609, 2
    %v611 = vmax.f32 %v609, %v610
    %v612 = vrot.slane %v611, 1
    %v613 = vmax.f32 %v611, %v612
    %v614 = vmax.f32 %v559, %v560
    %v615 = vrot.slane %v614, 4
    %v616 = vmax.f32 %v614, %v615
    %v617 = vrot.slane %v616, 2
    %v618 = vmax.f32 %v616, %v617
    %v619 = vrot.slane %v618, 1
    %v620 = vmax.f32 %v618, %v619
    %v625 = vsel %vm122, %v590, %v589
    %v626 = vsel %vm124, %v591, %v625
    %v627 = vsel %vm126, %v592, %v626
    %v633 = vsel %vm122, %v606, %v599
    %v634 = vsel %vm124, %v613, %v633
    %v635 = vsel %vm126, %v620, %v634
    %v637 = vld [vmem:[#allocation5] sm:$0xff]
    %v638 = vld [vmem:[#allocation5 + $0x8] sm:$0xff]
    %v639 = vld [vmem:[#allocation5 + $0x10] sm:$0xff]
    %v640 = vld [vmem:[#allocation5 + $0x18] sm:$0xff]
    %v641 = vld [vmem:[#allocation5 + $0x20] sm:$0xff]
    %v642 = vld [vmem:[#allocation5 + $0x28] sm:$0xff]
    %v643 = vld [vmem:[#allocation5 + $0x30] sm:$0xff]
    %v644 = vld [vmem:[#allocation5 + $0x38] sm:$0xff]
    %v645 = vld [vmem:[#allocation5 + $0x40] sm:$0xff]
    %v646 = vld [vmem:[#allocation5 + $0x48] sm:$0xff]
    %v647 = vld [vmem:[#allocation5 + $0x50] sm:$0xff]
    %v648 = vld [vmem:[#allocation5 + $0x58] sm:$0xff]
    %v649 = vld [vmem:[#allocation5 + $0x60] sm:$0xff]
    %v650 = vld [vmem:[#allocation5 + $0x68] sm:$0xff]
    %v651 = vld [vmem:[#allocation5 + $0x70] sm:$0xff]
    %v652 = vld [vmem:[#allocation5 + $0x78] sm:$0xff]
    %v653 = vld [vmem:[#allocation5 + $0x80] sm:$0xff]
    %v654 = vld [vmem:[#allocation5 + $0x88] sm:$0xff]
    %v655 = vld [vmem:[#allocation5 + $0x90] sm:$0xff]
    %v656 = vld [vmem:[#allocation5 + $0x98] sm:$0xff]
    %v657 = vld [vmem:[#allocation5 + $0xa0] sm:$0xff]
    %v658 = vld [vmem:[#allocation5 + $0xa8] sm:$0xff]
    %v659 = vld [vmem:[#allocation5 + $0xb0] sm:$0xff]
    %v660 = vld [vmem:[#allocation5 + $0xb8] sm:$0xff]
    %v661 = vld [vmem:[#allocation5 + $0xc0] sm:$0xff]
    %v662 = vld [vmem:[#allocation5 + $0xc8] sm:$0xff]
    %v663 = vld [vmem:[#allocation5 + $0xd0] sm:$0xff]
    %v664 = vld [vmem:[#allocation5 + $0xd8] sm:$0xff]
    %v665 = vld [vmem:[#allocation5 + $0xe0] sm:$0xff]
    %v666 = vld [vmem:[#allocation5 + $0xe8] sm:$0xff]
    %v667 = vld [vmem:[#allocation5 + $0xf0] sm:$0xff]
    %v668 = vld [vmem:[#allocation5 + $0xf8] sm:$0xff]
    %v669 = vand.u32 %v652, 4294901760
    %670 = vmatpush.msra.mxu0 %v669
    %v671 = vand.u32 %v651, 4294901760
    %672 = vmatpush.msra.mxu0 %v671
    %v673 = vand.u32 %v650, 4294901760
    %674 = vmatpush.msra.mxu0 %v673
    %v675 = vand.u32 %v649, 4294901760
    %676 = vmatpush.msra.mxu0 %v675
    %v677 = vand.u32 %v648, 4294901760
    %678 = vmatpush.msra.mxu0 %v677
    %v679 = vand.u32 %v647, 4294901760
    %680 = vmatpush.msra.mxu0 %v679
    %v681 = vand.u32 %v646, 4294901760
    %682 = vmatpush.msra.mxu0 %v681
    %v683 = vand.u32 %v645, 4294901760
    %684 = vmatpush.msra.mxu0 %v683
    %v685 = vand.u32 %v644, 4294901760
    %686 = vmatpush.msra.mxu0 %v685
    %v687 = vand.u32 %v643, 4294901760
    %688 = vmatpush.msra.mxu0 %v687
    %v689 = vand.u32 %v642, 4294901760
    %690 = vmatpush.msra.mxu0 %v689
    %v691 = vand.u32 %v641, 4294901760
    %692 = vmatpush.msra.mxu0 %v691
    %v693 = vand.u32 %v640, 4294901760
    %694 = vmatpush.msra.mxu0 %v693
    %v695 = vand.u32 %v639, 4294901760
    %696 = vmatpush.msra.mxu0 %v695
    %v697 = vand.u32 %v638, 4294901760
    %698 = vmatpush.msra.mxu0 %v697
    %v699 = vand.u32 %v637, 4294901760
    %700 = vmatpush.msra.mxu0 %v699
    %v701 = vand.u32 %v627, 4294901760
    %v702 = vsub.f32 %v627, %v701
    %v703 = vand.u32 %v702, 4294901760
    %v704 = vsub.f32 %v702, %v703
    %v705 = vand.u32 %v704, 4294901760
    %706 = vmatmul.f32.gmra.mxu0 %v705
    %v707 = vpop.f32.mrf.mxu0
    %v708 = vadd.f32 0.0, %v707
    %709 = vdwg.mxu0
    %v710 = vand.u32 %v652, 4294901760
    %v711 = vsub.f32 %v652, %v710
    %v712 = vand.u32 %v711, 4294901760
    %v713 = vsub.f32 %v711, %v712
    %v714 = vand.u32 %v713, 4294901760
    %715 = vmatpush.msra.mxu0 %v714
    %v716 = vand.u32 %v651, 4294901760
    %v717 = vsub.f32 %v651, %v716
    %v718 = vand.u32 %v717, 4294901760
    %v719 = vsub.f32 %v717, %v718
    %v720 = vand.u32 %v719, 4294901760
    %721 = vmatpush.msra.mxu0 %v720
    %v722 = vand.u32 %v650, 4294901760
    %v723 = vsub.f32 %v650, %v722
    %v724 = vand.u32 %v723, 4294901760
    %v725 = vsub.f32 %v723, %v724
    %v726 = vand.u32 %v725, 4294901760
    %727 = vmatpush.msra.mxu0 %v726
    %v728 = vand.u32 %v649, 4294901760
    %v729 = vsub.f32 %v649, %v728
    %v730 = vand.u32 %v729, 4294901760
    %v731 = vsub.f32 %v729, %v730
    %v732 = vand.u32 %v731, 4294901760
    %733 = vmatpush.msra.mxu0 %v732
    %v734 = vand.u32 %v648, 4294901760
    %v735 = vsub.f32 %v648, %v734
    %v736 = vand.u32 %v735, 4294901760
    %v737 = vsub.f32 %v735, %v736
    %v738 = vand.u32 %v737, 4294901760
    %739 = vmatpush.msra.mxu0 %v738
    %v740 = vand.u32 %v647, 4294901760
    %v741 = vsub.f32 %v647, %v740
    %v742 = vand.u32 %v741, 4294901760
    %v743 = vsub.f32 %v741, %v742
    %v744 = vand.u32 %v743, 4294901760
    %745 = vmatpush.msra.mxu0 %v744
    %v746 = vand.u32 %v646, 4294901760
    %v747 = vsub.f32 %v646, %v746
    %v748 = vand.u32 %v747, 4294901760
    %v749 = vsub.f32 %v747, %v748
    %v750 = vand.u32 %v749, 4294901760
    %751 = vmatpush.msra.mxu0 %v750
    %v752 = vand.u32 %v645, 4294901760
    %v753 = vsub.f32 %v645, %v752
    %v754 = vand.u32 %v753, 4294901760
    %v755 = vsub.f32 %v753, %v754
    %v756 = vand.u32 %v755, 4294901760
    %757 = vmatpush.msra.mxu0 %v756
    %v758 = vand.u32 %v644, 4294901760
    %v759 = vsub.f32 %v644, %v758
    %v760 = vand.u32 %v759, 4294901760
    %v761 = vsub.f32 %v759, %v760
    %v762 = vand.u32 %v761, 4294901760
    %763 = vmatpush.msra.mxu0 %v762
    %v764 = vand.u32 %v643, 4294901760
    %v765 = vsub.f32 %v643, %v764
    %v766 = vand.u32 %v765, 4294901760
    %v767 = vsub.f32 %v765, %v766
    %v768 = vand.u32 %v767, 4294901760
    %769 = vmatpush.msra.mxu0 %v768
    %v770 = vand.u32 %v642, 4294901760
    %v771 = vsub.f32 %v642, %v770
    %v772 = vand.u32 %v771, 4294901760
    %v773 = vsub.f32 %v771, %v772
    %v774 = vand.u32 %v773, 4294901760
    %775 = vmatpush.msra.mxu0 %v774
    %v776 = vand.u32 %v641, 4294901760
    %v777 = vsub.f32 %v641, %v776
    %v778 = vand.u32 %v777, 4294901760
    %v779 = vsub.f32 %v777, %v778
    %v780 = vand.u32 %v779, 4294901760
    %781 = vmatpush.msra.mxu0 %v780
    %v782 = vand.u32 %v640, 4294901760
    %v783 = vsub.f32 %v640, %v782
    %v784 = vand.u32 %v783, 4294901760
    %v785 = vsub.f32 %v783, %v784
    %v786 = vand.u32 %v785, 4294901760
    %787 = vmatpush.msra.mxu0 %v786
    %v788 = vand.u32 %v639, 4294901760
    %v789 = vsub.f32 %v639, %v788
    %v790 = vand.u32 %v789, 4294901760
    %v791 = vsub.f32 %v789, %v790
    %v792 = vand.u32 %v791, 4294901760
    %793 = vmatpush.msra.mxu0 %v792
    %v794 = vand.u32 %v638, 4294901760
    %v795 = vsub.f32 %v638, %v794
    %v796 = vand.u32 %v795, 4294901760
    %v797 = vsub.f32 %v795, %v796
    %v798 = vand.u32 %v797, 4294901760
    %799 = vmatpush.msra.mxu0 %v798
    %v800 = vand.u32 %v637, 4294901760
    %v801 = vsub.f32 %v637, %v800
    %v802 = vand.u32 %v801, 4294901760
    %v803 = vsub.f32 %v801, %v802
    %v804 = vand.u32 %v803, 4294901760
    %805 = vmatpush.msra.mxu0 %v804
    %v806 = vand.u32 %v627, 4294901760
    %807 = vmatmul.f32.gmra.mxu0 %v806
    %v808 = vpop.f32.mrf.mxu0
    %v809 = vadd.f32 %v708, %v808
    %810 = vdwg.mxu0
    %v811 = vand.u32 %v652, 4294901760
    %v812 = vsub.f32 %v652, %v811
    %813 = vmatpush.msra.mxu0 %v812
    %v814 = vand.u32 %v651, 4294901760
    %v815 = vsub.f32 %v651, %v814
    %816 = vmatpush.msra.mxu0 %v815
    %v817 = vand.u32 %v650, 4294901760
    %v818 = vsub.f32 %v650, %v817
    %819 = vmatpush.msra.mxu0 %v818
    %v820 = vand.u32 %v649, 4294901760
    %v821 = vsub.f32 %v649, %v820
    %822 = vmatpush.msra.mxu0 %v821
    %v823 = vand.u32 %v648, 4294901760
    %v824 = vsub.f32 %v648, %v823
    %825 = vmatpush.msra.mxu0 %v824
    %v826 = vand.u32 %v647, 4294901760
    %v827 = vsub.f32 %v647, %v826
    %828 = vmatpush.msra.mxu0 %v827
    %v829 = vand.u32 %v646, 4294901760
    %v830 = vsub.f32 %v646, %v829
    %831 = vmatpush.msra.mxu0 %v830
    %v832 = vand.u32 %v645, 4294901760
    %v833 = vsub.f32 %v645, %v832
    %834 = vmatpush.msra.mxu0 %v833
    %v835 = vand.u32 %v644, 4294901760
    %v836 = vsub.f32 %v644, %v835
    %837 = vmatpush.msra.mxu0 %v836
    %v838 = vand.u32 %v643, 4294901760
    %v839 = vsub.f32 %v643, %v838
    %840 = vmatpush.msra.mxu0 %v839
    %v841 = vand.u32 %v642, 4294901760
    %v842 = vsub.f32 %v642, %v841
    %843 = vmatpush.msra.mxu0 %v842
    %v844 = vand.u32 %v641, 4294901760
    %v845 = vsub.f32 %v641, %v844
    %846 = vmatpush.msra.mxu0 %v845
    %v847 = vand.u32 %v640, 4294901760
    %v848 = vsub.f32 %v640, %v847
    %849 = vmatpush.msra.mxu0 %v848
    %v850 = vand.u32 %v639, 4294901760
    %v851 = vsub.f32 %v639, %v850
    %852 = vmatpush.msra.mxu0 %v851
    %v853 = vand.u32 %v638, 4294901760
    %v854 = vsub.f32 %v638, %v853
    %855 = vmatpush.msra.mxu0 %v854
    %v856 = vand.u32 %v637, 4294901760
    %v857 = vsub.f32 %v637, %v856
    %858 = vmatpush.msra.mxu0 %v857
    %v859 = vand.u32 %v627, 4294901760
    %v860 = vsub.f32 %v627, %v859
    %861 = vmatmul.f32.gmra.mxu0 %v860
    %v862 = vpop.f32.mrf.mxu0
    %v863 = vadd.f32 %v809, %v862
    %864 = vdwg.mxu0
    %v865 = vand.u32 %v652, 4294901760
    %866 = vmatpush.msra.mxu0 %v865
    %v867 = vand.u32 %v651, 4294901760
    %868 = vmatpush.msra.mxu0 %v867
    %v869 = vand.u32 %v650, 4294901760
    %870 = vmatpush.msra.mxu0 %v869
    %v871 = vand.u32 %v649, 4294901760
    %872 = vmatpush.msra.mxu0 %v871
    %v873 = vand.u32 %v648, 4294901760
    %874 = vmatpush.msra.mxu0 %v873
    %v875 = vand.u32 %v647, 4294901760
    %876 = vmatpush.msra.mxu0 %v875
    %v877 = vand.u32 %v646, 4294901760
    %878 = vmatpush.msra.mxu0 %v877
    %v879 = vand.u32 %v645, 4294901760
    %880 = vmatpush.msra.mxu0 %v879
    %v881 = vand.u32 %v644, 4294901760
    %882 = vmatpush.msra.mxu0 %v881
    %v883 = vand.u32 %v643, 4294901760
    %884 = vmatpush.msra.mxu0 %v883
    %v885 = vand.u32 %v642, 4294901760
    %886 = vmatpush.msra.mxu0 %v885
    %v887 = vand.u32 %v641, 4294901760
    %888 = vmatpush.msra.mxu0 %v887
    %v889 = vand.u32 %v640, 4294901760
    %890 = vmatpush.msra.mxu0 %v889
    %v891 = vand.u32 %v639, 4294901760
    %892 = vmatpush.msra.mxu0 %v891
    %v893 = vand.u32 %v638, 4294901760
    %894 = vmatpush.msra.mxu0 %v893
    %v895 = vand.u32 %v637, 4294901760
    %896 = vmatpush.msra.mxu0 %v895
    %v897 = vand.u32 %v627, 4294901760
    %v898 = vsub.f32 %v627, %v897
    %v899 = vand.u32 %v898, 4294901760
    %900 = vmatmul.f32.gmra.mxu0 %v899
    %v901 = vpop.f32.mrf.mxu0
    %v902 = vadd.f32 %v863, %v901
    %903 = vdwg.mxu0
    %v904 = vand.u32 %v652, 4294901760
    %v905 = vsub.f32 %v652, %v904
    %v906 = vand.u32 %v905, 4294901760
    %907 = vmatpush.msra.mxu0 %v906
    %v908 = vand.u32 %v651, 4294901760
    %v909 = vsub.f32 %v651, %v908
    %v910 = vand.u32 %v909, 4294901760
    %911 = vmatpush.msra.mxu0 %v910
    %v912 = vand.u32 %v650, 4294901760
    %v913 = vsub.f32 %v650, %v912
    %v914 = vand.u32 %v913, 4294901760
    %915 = vmatpush.msra.mxu0 %v914
    %v916 = vand.u32 %v649, 4294901760
    %v917 = vsub.f32 %v649, %v916
    %v918 = vand.u32 %v917, 4294901760
    %919 = vmatpush.msra.mxu0 %v918
    %v920 = vand.u32 %v648, 4294901760
    %v921 = vsub.f32 %v648, %v920
    %v922 = vand.u32 %v921, 4294901760
    %923 = vmatpush.msra.mxu0 %v922
    %v924 = vand.u32 %v647, 4294901760
    %v925 = vsub.f32 %v647, %v924
    %v926 = vand.u32 %v925, 4294901760
    %927 = vmatpush.msra.mxu0 %v926
    %v928 = vand.u32 %v646, 4294901760
    %v929 = vsub.f32 %v646, %v928
    %v930 = vand.u32 %v929, 4294901760
    %931 = vmatpush.msra.mxu0 %v930
    %v932 = vand.u32 %v645, 4294901760
    %v933 = vsub.f32 %v645, %v932
    %v934 = vand.u32 %v933, 4294901760
    %935 = vmatpush.msra.mxu0 %v934
    %v936 = vand.u32 %v644, 4294901760
    %v937 = vsub.f32 %v644, %v936
    %v938 = vand.u32 %v937, 4294901760
    %939 = vmatpush.msra.mxu0 %v938
    %v940 = vand.u32 %v643, 4294901760
    %v941 = vsub.f32 %v643, %v940
    %v942 = vand.u32 %v941, 4294901760
    %943 = vmatpush.msra.mxu0 %v942
    %v944 = vand.u32 %v642, 4294901760
    %v945 = vsub.f32 %v642, %v944
    %v946 = vand.u32 %v945, 4294901760
    %947 = vmatpush.msra.mxu0 %v946
    %v948 = vand.u32 %v641, 4294901760
    %v949 = vsub.f32 %v641, %v948
    %v950 = vand.u32 %v949, 4294901760
    %951 = vmatpush.msra.mxu0 %v950
    %v952 = vand.u32 %v640, 4294901760
    %v953 = vsub.f32 %v640, %v952
    %v954 = vand.u32 %v953, 4294901760
    %955 = vmatpush.msra.mxu0 %v954
    %v956 = vand.u32 %v639, 4294901760
    %v957 = vsub.f32 %v639, %v956
    %v958 = vand.u32 %v957, 4294901760
    %959 = vmatpush.msra.mxu0 %v958
    %v960 = vand.u32 %v638, 4294901760
    %v961 = vsub.f32 %v638, %v960
    %v962 = vand.u32 %v961, 4294901760
    %963 = vmatpush.msra.mxu0 %v962
    %v964 = vand.u32 %v637, 4294901760
    %v965 = vsub.f32 %v637, %v964
    %v966 = vand.u32 %v965, 4294901760
    %967 = vmatpush.msra.mxu0 %v966
    %v968 = vand.u32 %v627, 4294901760
    %969 = vmatmul.f32.gmra.mxu0 %v968
    %v970 = vpop.f32.mrf.mxu0
    %v971 = vadd.f32 %v902, %v970
    %972 = vdwg.mxu0
    %v973 = vand.u32 %v652, 4294901760
    %974 = vmatpush.msra.mxu0 %v973
    %v975 = vand.u32 %v651, 4294901760
    %976 = vmatpush.msra.mxu0 %v975
    %v977 = vand.u32 %v650, 4294901760
    %978 = vmatpush.msra.mxu0 %v977
    %v979 = vand.u32 %v649, 4294901760
    %980 = vmatpush.msra.mxu0 %v979
    %v981 = vand.u32 %v648, 4294901760
    %982 = vmatpush.msra.mxu0 %v981
    %v983 = vand.u32 %v647, 4294901760
    %984 = vmatpush.msra.mxu0 %v983
    %v985 = vand.u32 %v646, 4294901760
    %986 = vmatpush.msra.mxu0 %v985
    %v987 = vand.u32 %v645, 4294901760
    %988 = vmatpush.msra.mxu0 %v987
    %v989 = vand.u32 %v644, 4294901760
    %990 = vmatpush.msra.mxu0 %v989
    %v991 = vand.u32 %v643, 4294901760
    %992 = vmatpush.msra.mxu0 %v991
    %v993 = vand.u32 %v642, 4294901760
    %994 = vmatpush.msra.mxu0 %v993
    %v995 = vand.u32 %v641, 4294901760
    %996 = vmatpush.msra.mxu0 %v995
    %v997 = vand.u32 %v640, 4294901760
    %998 = vmatpush.msra.mxu0 %v997
    %v999 = vand.u32 %v639, 4294901760
    %1000 = vmatpush.msra.mxu0 %v999
    %v1001 = vand.u32 %v638, 4294901760
    %1002 = vmatpush.msra.mxu0 %v1001
    %v1003 = vand.u32 %v637, 4294901760
    %1004 = vmatpush.msra.mxu0 %v1003
    %v1005 = vand.u32 %v627, 4294901760
    %1006 = vmatmul.f32.gmra.mxu0 %v1005
    %v1007 = vpop.f32.mrf.mxu0
    %v1008 = vadd.f32 %v971, %v1007
    %1009 = vdwg.mxu0
    %v1010 = vand.u32 %v668, 4294901760
    %1011 = vmatpush.msra.mxu0 %v1010
    %v1012 = vand.u32 %v667, 4294901760
    %1013 = vmatpush.msra.mxu0 %v1012
    %v1014 = vand.u32 %v666, 4294901760
    %1015 = vmatpush.msra.mxu0 %v1014
    %v1016 = vand.u32 %v665, 4294901760
    %1017 = vmatpush.msra.mxu0 %v1016
    %v1018 = vand.u32 %v664, 4294901760
    %1019 = vmatpush.msra.mxu0 %v1018
    %v1020 = vand.u32 %v663, 4294901760
    %1021 = vmatpush.msra.mxu0 %v1020
    %v1022 = vand.u32 %v662, 4294901760
    %1023 = vmatpush.msra.mxu0 %v1022
    %v1024 = vand.u32 %v661, 4294901760
    %1025 = vmatpush.msra.mxu0 %v1024
    %v1026 = vand.u32 %v660, 4294901760
    %1027 = vmatpush.msra.mxu0 %v1026
    %v1028 = vand.u32 %v659, 4294901760
    %1029 = vmatpush.msra.mxu0 %v1028
    %v1030 = vand.u32 %v658, 4294901760
    %1031 = vmatpush.msra.mxu0 %v1030
    %v1032 = vand.u32 %v657, 4294901760
    %1033 = vmatpush.msra.mxu0 %v1032
    %v1034 = vand.u32 %v656, 4294901760
    %1035 = vmatpush.msra.mxu0 %v1034
    %v1036 = vand.u32 %v655, 4294901760
    %1037 = vmatpush.msra.mxu0 %v1036
    %v1038 = vand.u32 %v654, 4294901760
    %1039 = vmatpush.msra.mxu0 %v1038
    %v1040 = vand.u32 %v653, 4294901760
    %1041 = vmatpush.msra.mxu0 %v1040
    %v1042 = vand.u32 %v635, 4294901760
    %v1043 = vsub.f32 %v635, %v1042
    %v1044 = vand.u32 %v1043, 4294901760
    %v1045 = vsub.f32 %v1043, %v1044
    %v1046 = vand.u32 %v1045, 4294901760
    %1047 = vmatmul.f32.gmra.mxu0 %v1046
    %v1048 = vpop.f32.mrf.mxu0
    %v1049 = vadd.f32 %v1008, %v1048
    %1050 = vdwg.mxu0
    %v1051 = vand.u32 %v668, 4294901760
    %v1052 = vsub.f32 %v668, %v1051
    %v1053 = vand.u32 %v1052, 4294901760
    %v1054 = vsub.f32 %v1052, %v1053
    %v1055 = vand.u32 %v1054, 4294901760
    %1056 = vmatpush.msra.mxu0 %v1055
    %v1057 = vand.u32 %v667, 4294901760
    %v1058 = vsub.f32 %v667, %v1057
    %v1059 = vand.u32 %v1058, 4294901760
    %v1060 = vsub.f32 %v1058, %v1059
    %v1061 = vand.u32 %v1060, 4294901760
    %1062 = vmatpush.msra.mxu0 %v1061
    %v1063 = vand.u32 %v666, 4294901760
    %v1064 = vsub.f32 %v666, %v1063
    %v1065 = vand.u32 %v1064, 4294901760
    %v1066 = vsub.f32 %v1064, %v1065
    %v1067 = vand.u32 %v1066, 4294901760
    %1068 = vmatpush.msra.mxu0 %v1067
    %v1069 = vand.u32 %v665, 4294901760
    %v1070 = vsub.f32 %v665, %v1069
    %v1071 = vand.u32 %v1070, 4294901760
    %v1072 = vsub.f32 %v1070, %v1071
    %v1073 = vand.u32 %v1072, 4294901760
    %1074 = vmatpush.msra.mxu0 %v1073
    %v1075 = vand.u32 %v664, 4294901760
    %v1076 = vsub.f32 %v664, %v1075
    %v1077 = vand.u32 %v1076, 4294901760
    %v1078 = vsub.f32 %v1076, %v1077
    %v1079 = vand.u32 %v1078, 4294901760
    %1080 = vmatpush.msra.mxu0 %v1079
    %v1081 = vand.u32 %v663, 4294901760
    %v1082 = vsub.f32 %v663, %v1081
    %v1083 = vand.u32 %v1082, 4294901760
    %v1084 = vsub.f32 %v1082, %v1083
    %v1085 = vand.u32 %v1084, 4294901760
    %1086 = vmatpush.msra.mxu0 %v1085
    %v1087 = vand.u32 %v662, 4294901760
    %v1088 = vsub.f32 %v662, %v1087
    %v1089 = vand.u32 %v1088, 4294901760
    %v1090 = vsub.f32 %v1088, %v1089
    %v1091 = vand.u32 %v1090, 4294901760
    %1092 = vmatpush.msra.mxu0 %v1091
    %v1093 = vand.u32 %v661, 4294901760
    %v1094 = vsub.f32 %v661, %v1093
    %v1095 = vand.u32 %v1094, 4294901760
    %v1096 = vsub.f32 %v1094, %v1095
    %v1097 = vand.u32 %v1096, 4294901760
    %1098 = vmatpush.msra.mxu0 %v1097
    %v1099 = vand.u32 %v660, 4294901760
    %v1100 = vsub.f32 %v660, %v1099
    %v1101 = vand.u32 %v1100, 4294901760
    %v1102 = vsub.f32 %v1100, %v1101
    %v1103 = vand.u32 %v1102, 4294901760
    %1104 = vmatpush.msra.mxu0 %v1103
    %v1105 = vand.u32 %v659, 4294901760
    %v1106 = vsub.f32 %v659, %v1105
    %v1107 = vand.u32 %v1106, 4294901760
    %v1108 = vsub.f32 %v1106, %v1107
    %v1109 = vand.u32 %v1108, 4294901760
    %1110 = vmatpush.msra.mxu0 %v1109
    %v1111 = vand.u32 %v658, 4294901760
    %v1112 = vsub.f32 %v658, %v1111
    %v1113 = vand.u32 %v1112, 4294901760
    %v1114 = vsub.f32 %v1112, %v1113
    %v1115 = vand.u32 %v1114, 4294901760
    %1116 = vmatpush.msra.mxu0 %v1115
    %v1117 = vand.u32 %v657, 4294901760
    %v1118 = vsub.f32 %v657, %v1117
    %v1119 = vand.u32 %v1118, 4294901760
    %v1120 = vsub.f32 %v1118, %v1119
    %v1121 = vand.u32 %v1120, 4294901760
    %1122 = vmatpush.msra.mxu0 %v1121
    %v1123 = vand.u32 %v656, 4294901760
    %v1124 = vsub.f32 %v656, %v1123
    %v1125 = vand.u32 %v1124, 4294901760
    %v1126 = vsub.f32 %v1124, %v1125
    %v1127 = vand.u32 %v1126, 4294901760
    %1128 = vmatpush.msra.mxu0 %v1127
    %v1129 = vand.u32 %v655, 4294901760
    %v1130 = vsub.f32 %v655, %v1129
    %v1131 = vand.u32 %v1130, 4294901760
    %v1132 = vsub.f32 %v1130, %v1131
    %v1133 = vand.u32 %v1132, 4294901760
    %1134 = vmatpush.msra.mxu0 %v1133
    %v1135 = vand.u32 %v654, 4294901760
    %v1136 = vsub.f32 %v654, %v1135
    %v1137 = vand.u32 %v1136, 4294901760
    %v1138 = vsub.f32 %v1136, %v1137
    %v1139 = vand.u32 %v1138, 4294901760
    %1140 = vmatpush.msra.mxu0 %v1139
    %v1141 = vand.u32 %v653, 4294901760
    %v1142 = vsub.f32 %v653, %v1141
    %v1143 = vand.u32 %v1142, 4294901760
    %v1144 = vsub.f32 %v1142, %v1143
    %v1145 = vand.u32 %v1144, 4294901760
    %1146 = vmatpush.msra.mxu0 %v1145
    %v1147 = vand.u32 %v635, 4294901760
    %1148 = vmatmul.f32.gmra.mxu0 %v1147
    %v1149 = vpop.f32.mrf.mxu0
    %v1150 = vadd.f32 %v1049, %v1149
    %1151 = vdwg.mxu0
    %v1152 = vand.u32 %v668, 4294901760
    %v1153 = vsub.f32 %v668, %v1152
    %1154 = vmatpush.msra.mxu0 %v1153
    %v1155 = vand.u32 %v667, 4294901760
    %v1156 = vsub.f32 %v667, %v1155
    %1157 = vmatpush.msra.mxu0 %v1156
    %v1158 = vand.u32 %v666, 4294901760
    %v1159 = vsub.f32 %v666, %v1158
    %1160 = vmatpush.msra.mxu0 %v1159
    %v1161 = vand.u32 %v665, 4294901760
    %v1162 = vsub.f32 %v665, %v1161
    %1163 = vmatpush.msra.mxu0 %v1162
    %v1164 = vand.u32 %v664, 4294901760
    %v1165 = vsub.f32 %v664, %v1164
    %1166 = vmatpush.msra.mxu0 %v1165
    %v1167 = vand.u32 %v663, 4294901760
    %v1168 = vsub.f32 %v663, %v1167
    %1169 = vmatpush.msra.mxu0 %v1168
    %v1170 = vand.u32 %v662, 4294901760
    %v1171 = vsub.f32 %v662, %v1170
    %1172 = vmatpush.msra.mxu0 %v1171
    %v1173 = vand.u32 %v661, 4294901760
    %v1174 = vsub.f32 %v661, %v1173
    %1175 = vmatpush.msra.mxu0 %v1174
    %v1176 = vand.u32 %v660, 4294901760
    %v1177 = vsub.f32 %v660, %v1176
    %1178 = vmatpush.msra.mxu0 %v1177
    %v1179 = vand.u32 %v659, 4294901760
    %v1180 = vsub.f32 %v659, %v1179
    %1181 = vmatpush.msra.mxu0 %v1180
    %v1182 = vand.u32 %v658, 4294901760
    %v1183 = vsub.f32 %v658, %v1182
    %1184 = vmatpush.msra.mxu0 %v1183
    %v1185 = vand.u32 %v657, 4294901760
    %v1186 = vsub.f32 %v657, %v1185
    %1187 = vmatpush.msra.mxu0 %v1186
    %v1188 = vand.u32 %v656, 4294901760
    %v1189 = vsub.f32 %v656, %v1188
    %1190 = vmatpush.msra.mxu0 %v1189
    %v1191 = vand.u32 %v655, 4294901760
    %v1192 = vsub.f32 %v655, %v1191
    %1193 = vmatpush.msra.mxu0 %v1192
    %v1194 = vand.u32 %v654, 4294901760
    %v1195 = vsub.f32 %v654, %v1194
    %1196 = vmatpush.msra.mxu0 %v1195
    %v1197 = vand.u32 %v653, 4294901760
    %v1198 = vsub.f32 %v653, %v1197
    %1199 = vmatpush.msra.mxu0 %v1198
    %v1200 = vand.u32 %v635, 4294901760
    %v1201 = vsub.f32 %v635, %v1200
    %1202 = vmatmul.f32.gmra.mxu0 %v1201
    %v1203 = vpop.f32.mrf.mxu0
    %v1204 = vadd.f32 %v1150, %v1203
    %1205 = vdwg.mxu0
    %v1206 = vand.u32 %v668, 4294901760
    %1207 = vmatpush.msra.mxu0 %v1206
    %v1208 = vand.u32 %v667, 4294901760
    %1209 = vmatpush.msra.mxu0 %v1208
    %v1210 = vand.u32 %v666, 4294901760
    %1211 = vmatpush.msra.mxu0 %v1210
    %v1212 = vand.u32 %v665, 4294901760
    %1213 = vmatpush.msra.mxu0 %v1212
    %v1214 = vand.u32 %v664, 4294901760
    %1215 = vmatpush.msra.mxu0 %v1214
    %v1216 = vand.u32 %v663, 4294901760
    %1217 = vmatpush.msra.mxu0 %v1216
    %v1218 = vand.u32 %v662, 4294901760
    %1219 = vmatpush.msra.mxu0 %v1218
    %v1220 = vand.u32 %v661, 4294901760
    %1221 = vmatpush.msra.mxu0 %v1220
    %v1222 = vand.u32 %v660, 4294901760
    %1223 = vmatpush.msra.mxu0 %v1222
    %v1224 = vand.u32 %v659, 4294901760
    %1225 = vmatpush.msra.mxu0 %v1224
    %v1226 = vand.u32 %v658, 4294901760
    %1227 = vmatpush.msra.mxu0 %v1226
    %v1228 = vand.u32 %v657, 4294901760
    %1229 = vmatpush.msra.mxu0 %v1228
    %v1230 = vand.u32 %v656, 4294901760
    %1231 = vmatpush.msra.mxu0 %v1230
    %v1232 = vand.u32 %v655, 4294901760
    %1233 = vmatpush.msra.mxu0 %v1232
    %v1234 = vand.u32 %v654, 4294901760
    %1235 = vmatpush.msra.mxu0 %v1234
    %v1236 = vand.u32 %v653, 4294901760
    %1237 = vmatpush.msra.mxu0 %v1236
    %v1238 = vand.u32 %v635, 4294901760
    %v1239 = vsub.f32 %v635, %v1238
    %v1240 = vand.u32 %v1239, 4294901760
    %1241 = vmatmul.f32.gmra.mxu0 %v1240
    %v1242 = vpop.f32.mrf.mxu0
    %v1243 = vadd.f32 %v1204, %v1242
    %1244 = vdwg.mxu0
    %v1245 = vand.u32 %v668, 4294901760
    %v1246 = vsub.f32 %v668, %v1245
    %v1247 = vand.u32 %v1246, 4294901760
    %1248 = vmatpush.msra.mxu0 %v1247
    %v1249 = vand.u32 %v667, 4294901760
    %v1250 = vsub.f32 %v667, %v1249
    %v1251 = vand.u32 %v1250, 4294901760
    %1252 = vmatpush.msra.mxu0 %v1251
    %v1253 = vand.u32 %v666, 4294901760
    %v1254 = vsub.f32 %v666, %v1253
    %v1255 = vand.u32 %v1254, 4294901760
    %1256 = vmatpush.msra.mxu0 %v1255
    %v1257 = vand.u32 %v665, 4294901760
    %v1258 = vsub.f32 %v665, %v1257
    %v1259 = vand.u32 %v1258, 4294901760
    %1260 = vmatpush.msra.mxu0 %v1259
    %v1261 = vand.u32 %v664, 4294901760
    %v1262 = vsub.f32 %v664, %v1261
    %v1263 = vand.u32 %v1262, 4294901760
    %1264 = vmatpush.msra.mxu0 %v1263
    %v1265 = vand.u32 %v663, 4294901760
    %v1266 = vsub.f32 %v663, %v1265
    %v1267 = vand.u32 %v1266, 4294901760
    %1268 = vmatpush.msra.mxu0 %v1267
    %v1269 = vand.u32 %v662, 4294901760
    %v1270 = vsub.f32 %v662, %v1269
    %v1271 = vand.u32 %v1270, 4294901760
    %1272 = vmatpush.msra.mxu0 %v1271
    %v1273 = vand.u32 %v661, 4294901760
    %v1274 = vsub.f32 %v661, %v1273
    %v1275 = vand.u32 %v1274, 4294901760
    %1276 = vmatpush.msra.mxu0 %v1275
    %v1277 = vand.u32 %v660, 4294901760
    %v1278 = vsub.f32 %v660, %v1277
    %v1279 = vand.u32 %v1278, 4294901760
    %1280 = vmatpush.msra.mxu0 %v1279
    %v1281 = vand.u32 %v659, 4294901760
    %v1282 = vsub.f32 %v659, %v1281
    %v1283 = vand.u32 %v1282, 4294901760
    %1284 = vmatpush.msra.mxu0 %v1283
    %v1285 = vand.u32 %v658, 4294901760
    %v1286 = vsub.f32 %v658, %v1285
    %v1287 = vand.u32 %v1286, 4294901760
    %1288 = vmatpush.msra.mxu0 %v1287
    %v1289 = vand.u32 %v657, 4294901760
    %v1290 = vsub.f32 %v657, %v1289
    %v1291 = vand.u32 %v1290, 4294901760
    %1292 = vmatpush.msra.mxu0 %v1291
    %v1293 = vand.u32 %v656, 4294901760
    %v1294 = vsub.f32 %v656, %v1293
    %v1295 = vand.u32 %v1294, 4294901760
    %1296 = vmatpush.msra.mxu0 %v1295
    %v1297 = vand.u32 %v655, 4294901760
    %v1298 = vsub.f32 %v655, %v1297
    %v1299 = vand.u32 %v1298, 4294901760
    %1300 = vmatpush.msra.mxu0 %v1299
    %v1301 = vand.u32 %v654, 4294901760
    %v1302 = vsub.f32 %v654, %v1301
    %v1303 = vand.u32 %v1302, 4294901760
    %1304 = vmatpush.msra.mxu0 %v1303
    %v1305 = vand.u32 %v653, 4294901760
    %v1306 = vsub.f32 %v653, %v1305
    %v1307 = vand.u32 %v1306, 4294901760
    %1308 = vmatpush.msra.mxu0 %v1307
    %v1309 = vand.u32 %v635, 4294901760
    %1310 = vmatmul.f32.gmra.mxu0 %v1309
    %v1311 = vpop.f32.mrf.mxu0
    %v1312 = vadd.f32 %v1243, %v1311
    %1313 = vdwg.mxu0
    %v1314 = vand.u32 %v668, 4294901760
    %1315 = vmatpush.msra.mxu0 %v1314
    %v1316 = vand.u32 %v667, 4294901760
    %1317 = vmatpush.msra.mxu0 %v1316
    %v1318 = vand.u32 %v666, 4294901760
    %1319 = vmatpush.msra.mxu0 %v1318
    %v1320 = vand.u32 %v665, 4294901760
    %1321 = vmatpush.msra.mxu0 %v1320
    %v1322 = vand.u32 %v664, 4294901760
    %1323 = vmatpush.msra.mxu0 %v1322
    %v1324 = vand.u32 %v663, 4294901760
    %1325 = vmatpush.msra.mxu0 %v1324
    %v1326 = vand.u32 %v662, 4294901760
    %1327 = vmatpush.msra.mxu0 %v1326
    %v1328 = vand.u32 %v661, 4294901760
    %1329 = vmatpush.msra.mxu0 %v1328
    %v1330 = vand.u32 %v660, 4294901760
    %1331 = vmatpush.msra.mxu0 %v1330
    %v1332 = vand.u32 %v659, 4294901760
    %1333 = vmatpush.msra.mxu0 %v1332
    %v1334 = vand.u32 %v658, 4294901760
    %1335 = vmatpush.msra.mxu0 %v1334
    %v1336 = vand.u32 %v657, 4294901760
    %1337 = vmatpush.msra.mxu0 %v1336
    %v1338 = vand.u32 %v656, 4294901760
    %1339 = vmatpush.msra.mxu0 %v1338
    %v1340 = vand.u32 %v655, 4294901760
    %1341 = vmatpush.msra.mxu0 %v1340
    %v1342 = vand.u32 %v654, 4294901760
    %1343 = vmatpush.msra.mxu0 %v1342
    %v1344 = vand.u32 %v653, 4294901760
    %1345 = vmatpush.msra.mxu0 %v1344
    %v1346 = vand.u32 %v635, 4294901760
    %1347 = vmatmul.f32.gmra.mxu0 %v1346
    %v1348 = vpop.f32.mrf.mxu0
    %v1349 = vadd.f32 %v1312, %v1348
    %1350 = vdwg.mxu0
    %v1351 = vxor.u32 %v1349, 2147483648
    %v1352 = vmul.f32 %v1351, 1.442695
    %v1353 = vpow.pop %v1352
    %v1354 = vadd.f32 %v1353, 1.0
    %v1355 = vrcp.pop %v1354
    %v1356 = vmul.f32 %v1354, %v1355
    %v1357 = vsub.f32 1.0, %v1356
    %v1358 = vmul.f32 %v1355, %v1357
    %v1359 = vadd.f32 %v1355, %v1358
    %vm1360 = vweird.f32 %v1354
    %vm1361 = vweird.f32 %v1355
    %vm1362 = vmor %vm1360, %vm1361
    %v1363 = vsel %vm1362, %v1355, %v1359
    %v1364 = vand.u32 2147483647, %v1354
    %vm1365 = vcmp.eq.f32.partialorder %v1364, 8.507059e+37
    %v1366 = vand.u32 %v1354, 2147483648
    %v1367 = vor.u32 1.1754944e-38, %v1366
    %v1368 = vsel %vm1365, %v1367, %v1363
    %v1369 = vmul.f32 1.0, %v1368
    %v1371 = vrot.slane %v1369, 1
    %v1372 = vrot.slane %v1369, 2
    %v1373 = vrot.slane %v1369, 3
    %v1374 = vperm.slane %v1369, 0
    %v1375 = vperm.slane %v1371, 0
    %v1376 = vperm.slane %v1372, 0
    %v1377 = vperm.slane %v1373, 0
    %v1382 = vmul.f32 %v507, %v1374
    %v1383 = vmul.f32 %v513, %v1374
    %v1384 = vmul.f32 %v520, %v1375
    %v1385 = vmul.f32 %v526, %v1375
    %v1386 = vmul.f32 %v533, %v1376
    %v1387 = vmul.f32 %v539, %v1376
    %v1388 = vmul.f32 %v546, %v1377
    %v1389 = vmul.f32 %v552, %v1377
    %v1390 = vmul.f32 %v50, %v1382
    %v1391 = vmul.f32 %v51, %v1383
    %v1392 = vmul.f32 %v52, %v1384
    %v1393 = vmul.f32 %v53, %v1385
    %v1394 = vmul.f32 %v54, %v1386
    %v1395 = vmul.f32 %v55, %v1387
    %v1396 = vmul.f32 %v56, %v1388
    %v1397 = vmul.f32 %v57, %v1389
    %1398 = vst [vmem:[#allocation7] sm:$0xff] %v1390
    %1399 = vst [vmem:[#allocation7 + $0x8] sm:$0xff] %v1391
    %1400 = vst [vmem:[#allocation7 + $0x10] sm:$0xff] %v1392
    %1401 = vst [vmem:[#allocation7 + $0x18] sm:$0xff] %v1393
    %1402 = vst [vmem:[#allocation7 + $0x20] sm:$0xff] %v1394
    %1403 = vst [vmem:[#allocation7 + $0x28] sm:$0xff] %v1395
    %1404 = vst [vmem:[#allocation7 + $0x30] sm:$0xff] %v1396
    %1405 = vst [vmem:[#allocation7 + $0x38] sm:$0xff] %v1397
    // Predicated region
    $region26: #{tpu_custom_call.1} parent=1 // pred_check
      _
    $region27: #{tpu_custom_call.1} parent=1 // pred_check_branch
      %1407 = sbr.rel (0) target = $region29
    $region28: #{tpu_custom_call.1} parent=1 // pred_region
      %1409 = vsyncadd [#allocation4], 0
      %s1410 = sshll.u32 [#allocation7], 4
      %s1411 = int_to_ptr.vmem [resolvable:$true] %s1410
      %s1412 = sshll.u32 %s4, 4
      %s1413 = int_to_ptr.hbm [resolvable:$true] %s1412
      %1418 = dma.vmem_to_hbm [thread:$0]  %s1411, 1024, %s1413, [#allocation4], 128, 128, 8
    $region29: #{tpu_custom_call.1} parent=1 // pred_fallthru
      _
    // Predicated region
    $region30: #{tpu_custom_call.1} parent=1 // pred_check
      _
    $region31: #{tpu_custom_call.1} parent=1 // pred_check_branch
      %1420 = sbr.rel (0) target = $region33
    $region32: #{tpu_custom_call.1} parent=1 // pred_region
      %1422 = dma.done [#allocation4], 1024
    $region33: #{tpu_custom_call.1} parent=1 // pred_fallthru
      _
    %1423 = vsyncpa [#allocation3], 1
    %1424 = vsyncpa [#allocation6], 1
    %1425 = vsyncpa [#allocation4], 1

</llo_original>
